<compile_context>
chip_gen: v7x
topology: tpu7x:2x2x1
jax: 0.10.0
libtpu: 0.0.40
codegen_flags: <defaults>
</compile_context>

<pallas_src>
import jax
import jax.numpy as jnp
from jax.experimental import pallas as pl
from jax.experimental.pallas import tpu as pltpu

OUT_DIM = {2: 39, 4: 35, 6: 31}


# ----------------------------------------------------------------------------- glue
def _im2col_nchw_T(x, ksize, stride, out_dtype):
    """x: (N, C, H, W) -> patches^T (N, ksize*ksize*C, OH*OW); K ordered (kh, kw, c)."""
    N, C, H, W = x.shape
    OH = (H - ksize) // stride + 1
    OW = (W - ksize) // stride + 1
    cols = []
    for kh in range(ksize):
        for kw in range(ksize):
            sl = x[:, :, kh:kh + stride * OH:stride, kw:kw + stride * OW:stride]  # (N,C,OH,OW)
            cols.append(sl.reshape(N, C, OH * OW).astype(out_dtype))
    return jnp.concatenate(cols, axis=1), OH, OW  # (N, K, M)


# --------------------------------------------------------------------- conv kernel
def _conv_t_relu_kernel(p_ref, w_ref, b_ref, o_ref):
    # p_ref: (1, K, M)   w_ref: (Cout, K)   b_ref: (Cout, 1)   o_ref: (1, Cout, M)
    acc = jnp.dot(w_ref[...], p_ref[0], preferred_element_type=jnp.float32)
    o_ref[0] = jnp.maximum(acc + b_ref[...], 0.0).astype(o_ref.dtype)  # bias + ReLU


def conv2d_relu_cm(x_nchw, w, b, *, stride, compute_dtype=jnp.float32,
                   out_dtype=jnp.float32):
    """3x3 VALID conv + bias + ReLU.  Channel-major, lane-dense output (N, Cout, OH*OW).

    w: (Cout, Cin, 3, 3) (PyTorch OIHW), b: (Cout,).
    """
    Cout, Cin, KH, KW = w.shape
    patches, OH, OW = _im2col_nchw_T(x_nchw, KH, stride, compute_dtype)
    N, K, M = patches.shape
    # patch K order is (kh, kw, cin) -> reorder weight accordingly
    w_mat = jnp.transpose(w, (0, 2, 3, 1)).reshape(Cout, K).astype(compute_dtype)
    b2 = b.reshape(Cout, 1).astype(jnp.float32)

    out = pl.pallas_call(
        _conv_t_relu_kernel,
        out_shape=jax.ShapeDtypeStruct((N, Cout, M), out_dtype),
        grid=(N,),
        in_specs=[
            pl.BlockSpec((1, K, M), lambda n: (n, 0, 0)),
            pl.BlockSpec((Cout, K), lambda n: (0, 0)),
            pl.BlockSpec((Cout, 1), lambda n: (0, 0)),
        ],
        out_specs=pl.BlockSpec((1, Cout, M), lambda n: (n, 0, 0)),
        compiler_params=pltpu.CompilerParams(dimension_semantics=("parallel",)),
    )(patches, w_mat, b2)
    return out, OH, OW


# --------------------------------------------------------------------- head kernel
def _head_kernel(h_ref, wfc_ref, bfc_ref, g_ref, beta_ref,
                 wmu_ref, bmu_ref, wlv_ref, blv_ref, eps_ref,
                 z_ref, mu_ref, lv_ref, acc_ref):
    # h: (B, tk) bf16   wfc: (tk, F) bf16   acc: (B, F) f32
    k = pl.program_id(0)

    @pl.when(k == 0)
    def _():
        acc_ref[...] = jnp.zeros_like(acc_ref)

    acc_ref[...] += jnp.dot(h_ref[...], wfc_ref[...],
                            preferred_element_type=jnp.float32)

    @pl.when(k == pl.num_programs(0) - 1)
    def _():
        h_fc = acc_ref[...] + bfc_ref[...]
        # LayerNorm (biased variance, eps=1e-5, as torch.nn.LayerNorm) -- all f32
        mean = jnp.mean(h_fc, axis=-1, keepdims=True)
        var = jnp.mean(jnp.square(h_fc - mean), axis=-1, keepdims=True)
        h_norm = (h_fc - mean) * jax.lax.rsqrt(var + 1e-5) * g_ref[...] + beta_ref[...]
        out = jnp.tanh(h_norm)
        mu = jnp.dot(out, wmu_ref[...], preferred_element_type=jnp.float32) + bmu_ref[...]
        lv = jnp.dot(out, wlv_ref[...], preferred_element_type=jnp.float32) + blv_ref[...]
        # reparameterize: z = mu + eps * exp(log_var)
        # (matches the module's std = exp(logvar), deliberately NOT exp(0.5*logvar))
        z_ref[...] = mu + eps_ref[...] * jnp.exp(lv)
        mu_ref[...] = mu
        lv_ref[...] = lv


# -------------------------------------------------------------------------- forward
def pixel_vae_encoder_forward(params, obs_nchw, eps, *, tk=16384):
    """Returns (z, (mu, log_var)) — same as PixelVaeEncoder.forward."""
    x = obs_nchw.astype(jnp.float32)

    # conv1 (stride 2): fold obs/255 into the weights at trace time, f32 (tiny).
    c1, oh1, ow1 = conv2d_relu_cm(x, params["w1"] / 255.0, params["b1"], stride=2,
                                  compute_dtype=jnp.float32, out_dtype=jnp.float32)
    N, C1, _ = c1.shape
    c1 = c1.reshape(N, C1, oh1, ow1)  # contiguous reshape (already channel-major)

    # conv2 (stride 1): bf16 MXU operands, bf16 channel-major output == NCHW flatten.
    c2, oh2, ow2 = conv2d_relu_cm(c1, params["w2"], params["b2"], stride=1,
                                  compute_dtype=jnp.bfloat16, out_dtype=jnp.bfloat16)
    N, C2, M2 = c2.shape
    h = c2.reshape(N, C2 * M2)        # == torch's conv.view(N, -1) on NCHW, no transpose

    D = C2 * M2
    F = params["wfc"].shape[0]
    L = params["wmu"].shape[0]

    # Tile the reduction dim; pad with zeros so it divides evenly (zeros add nothing).
    KT = pl.cdiv(D, tk)
    Dp = KT * tk
    h_p = jnp.pad(h, ((0, 0), (0, Dp - D)))
    wfcT = jnp.pad(params["wfc"].T, ((0, Dp - D), (0, 0))).astype(jnp.bfloat16)

    z, mu, lv = pl.pallas_call(
        _head_kernel,
        out_shape=(
            jax.ShapeDtypeStruct((N, L), jnp.float32),
            jax.ShapeDtypeStruct((N, L), jnp.float32),
            jax.ShapeDtypeStruct((N, L), jnp.float32),
        ),
        grid=(KT,),
        in_specs=[
            pl.BlockSpec((N, tk), lambda k: (0, k)),   # h tile (bf16)
            pl.BlockSpec((tk, F), lambda k: (k, 0)),   # wfc^T tile (bf16, pipelined)
            pl.BlockSpec((1, F), lambda k: (0, 0)),    # bfc
            pl.BlockSpec((1, F), lambda k: (0, 0)),    # ln gamma
            pl.BlockSpec((1, F), lambda k: (0, 0)),    # ln beta
            pl.BlockSpec((F, L), lambda k: (0, 0)),    # wmu^T
            pl.BlockSpec((1, L), lambda k: (0, 0)),    # bmu
            pl.BlockSpec((F, L), lambda k: (0, 0)),    # wlv^T
            pl.BlockSpec((1, L), lambda k: (0, 0)),    # blv
            pl.BlockSpec((N, L), lambda k: (0, 0)),    # eps
        ],
        out_specs=(
            pl.BlockSpec((N, L), lambda k: (0, 0)),
            pl.BlockSpec((N, L), lambda k: (0, 0)),
            pl.BlockSpec((N, L), lambda k: (0, 0)),
        ),
        scratch_shapes=[pltpu.VMEM((N, F), jnp.float32)],
        compiler_params=pltpu.CompilerParams(dimension_semantics=("arbitrary",)),
    )(
        h_p, wfcT,
        params["bfc"].reshape(1, F), params["g"].reshape(1, F), params["beta"].reshape(1, F),
        params["wmu"].T, params["bmu"].reshape(1, L),
        params["wlv"].T, params["blv"].reshape(1, L),
        eps,
    )
    return z, (mu, lv)


# ----------------------------------------------------------------------- reference
def reference_forward(params, obs_nchw, eps):
    obs = obs_nchw.astype(jnp.float32) / 255.0
    x = jax.lax.conv_general_dilated(obs, params["w1"], (2, 2), "VALID",
                                     dimension_numbers=("NCHW", "OIHW", "NCHW"))
    x = jax.nn.relu(x + params["b1"][None, :, None, None])
    x = jax.lax.conv_general_dilated(x, params["w2"], (1, 1), "VALID",
                                     dimension_numbers=("NCHW", "OIHW", "NCHW"))
    x = jax.nn.relu(x + params["b2"][None, :, None, None])
    h = x.reshape(x.shape[0], -1)
    h_fc = h @ params["wfc"].T + params["bfc"]
    mean = h_fc.mean(-1, keepdims=True)
    var = jnp.square(h_fc - mean).mean(-1, keepdims=True)
    h_norm = (h_fc - mean) / jnp.sqrt(var + 1e-5) * params["g"] + params["beta"]
    out = jnp.tanh(h_norm)
    mu = out @ params["wmu"].T + params["bmu"]
    lv = out @ params["wlv"].T + params["blv"]
    return mu + eps * jnp.exp(lv), (mu, lv)


# ---------------------------------------------------------------------------- init
def init_params(key, obs_c, num_filters, feature_dim, latent_dim, num_layers=2):
    out_dim = OUT_DIM[num_layers]
    D = num_filters * out_dim * out_dim
    ks = jax.random.split(key, 10)
    return {
        "w1": 0.05 * jax.random.normal(ks[0], (num_filters, obs_c, 3, 3), jnp.float32),
        "b1": 0.05 * jax.random.normal(ks[1], (num_filters,), jnp.float32),
        "w2": 0.05 * jax.random.normal(ks[2], (num_filters, num_filters, 3, 3), jnp.float32),
        "b2": 0.05 * jax.random.normal(ks[3], (num_filters,), jnp.float32),
        "wfc": jax.random.normal(ks[4], (feature_dim, D), jnp.float32) / jnp.sqrt(D),
        "bfc": 0.01 * jax.random.normal(ks[5], (feature_dim,), jnp.float32),
        "g": jnp.ones((feature_dim,), jnp.float32),      # LayerNorm weight
        "beta": jnp.zeros((feature_dim,), jnp.float32),  # LayerNorm bias
        "wmu": jax.random.normal(ks[6], (latent_dim, feature_dim), jnp.float32) / jnp.sqrt(feature_dim),
        "bmu": 0.01 * jax.random.normal(ks[7], (latent_dim,), jnp.float32),
        "wlv": jax.random.normal(ks[8], (latent_dim, feature_dim), jnp.float32) / jnp.sqrt(feature_dim),
        "blv": 0.01 * jax.random.normal(ks[9], (latent_dim,), jnp.float32),
    }


if __name__ == "__main__":
    batch, obs_c, spatial = 2, 3, 84          # spatial=84 required by OUT_DIM[num_layers=2]==39
    num_filters, feature_dim, latent_dim = 32, 32, 16

    key = jax.random.PRNGKey(0)
    k_obs, k_eps, k_par = jax.random.split(key, 3)

    obs = jax.random.uniform(k_obs, (batch, obs_c, spatial, spatial),
                             minval=0.0, maxval=255.0, dtype=jnp.float32)
    # eps plays the role of torch.randn_like(std) in reparameterize (deterministic input)
    eps = jax.random.normal(k_eps, (batch, latent_dim), dtype=jnp.float32)
    params = init_params(k_par, obs_c, num_filters, feature_dim, latent_dim)

    z, (mu, log_var) = pixel_vae_encoder_forward(params, obs, eps)
    jax.block_until_ready((z, mu, log_var))

    z_r, (mu_r, lv_r) = reference_forward(params, obs, eps)
    # tolerance consistent with bf16 MXU operands (f32 accumulation / element-wise)
    assert jnp.allclose(mu, mu_r, rtol=3e-2, atol=3e-2)
    assert jnp.allclose(log_var, lv_r, rtol=3e-2, atol=3e-2)
    assert jnp.allclose(z, z_r, rtol=3e-2, atol=3e-2)

    print("KERNEL_OK")
</pallas_src>

<mosaic_0001>
module attributes {stable_mosaic.version = 11 : i64} {
  func.func @_conv_t_relu_kernel(%arg0: i32, %arg1: memref<1x27x1681xf32, #tpu.memory_space<vmem>>, %arg2: memref<32x27xf32, #tpu.memory_space<vmem>>, %arg3: memref<32x1xf32, #tpu.memory_space<vmem>>, %arg4: memref<1x32x1681xf32, #tpu.memory_space<vmem>>) attributes {dimension_semantics = [#tpu.dimension_semantics<parallel>], iteration_bounds = array<i64: 2>, scalar_prefetch = 0 : i64, scratch_operands = 0 : i64, tpu.core_type = #tpu.core_type<tc>, window_params = [{transform_indices = @transform_0, window_bounds = array<i64: 1, 27, 1681>}, {pipeline_mode = #tpu.pipeline_mode<synchronous>, transform_indices = @transform_1, window_bounds = array<i64: 32, 27>}, {pipeline_mode = #tpu.pipeline_mode<synchronous>, transform_indices = @transform_2, window_bounds = array<i64: 32, 1>}, {transform_indices = @transform_3, window_bounds = array<i64: 1, 32, 1681>}]} {
    %c0 = arith.constant 0 : index
    %c0_0 = arith.constant 0 : index
    %0 = vector.load %arg2[%c0, %c0_0] : memref<32x27xf32, #tpu.memory_space<vmem>>, vector<32x27xf32>
    %c0_1 = arith.constant 0 : index
    %c0_2 = arith.constant 0 : index
    %c0_3 = arith.constant 0 : index
    %1 = vector.load %arg1[%c0_1, %c0_2, %c0_3] : memref<1x27x1681xf32, #tpu.memory_space<vmem>>, vector<1x27x1681xf32>
    %2 = vector.shape_cast %1 : vector<1x27x1681xf32> to vector<27x1681xf32>
    %cst = arith.constant dense<0.000000e+00> : vector<32x1681xf32>
    %3 = tpu.matmul %0, %2, %cst {dimension_numbers = #tpu.dot_dimension_numbers<[1], [0], [0], [1], [0, 0, 1, 1], [], []>} : vector<32x27xf32>, vector<27x1681xf32>, vector<32x1681xf32> -> vector<32x1681xf32>
    %c0_4 = arith.constant 0 : index
    %c0_5 = arith.constant 0 : index
    %4 = vector.load %arg3[%c0_4, %c0_5] : memref<32x1xf32, #tpu.memory_space<vmem>>, vector<32x1xf32>
    %5 = vector.broadcast %4 : vector<32x1xf32> to vector<32x1681xf32>
    %6 = arith.addf %3, %5 : vector<32x1681xf32>
    %cst_6 = arith.constant 0.000000e+00 : f32
    %7 = vector.broadcast %cst_6 : f32 to vector<32x1681xf32>
    %8 = arith.maximumf %6, %7 : vector<32x1681xf32>
    %c0_7 = arith.constant 0 : index
    %c0_8 = arith.constant 0 : index
    %c0_9 = arith.constant 0 : index
    %9 = vector.load %arg4[%c0_7, %c0_8, %c0_9] : memref<1x32x1681xf32, #tpu.memory_space<vmem>>, vector<1x32x1681xf32>
    %10 = vector.shape_cast %9 : vector<1x32x1681xf32> to vector<32x1681xf32>
    %11 = vector.shape_cast %8 : vector<32x1681xf32> to vector<1x32x1681xf32>
    tpu.vector_store %arg4[%c0_7, %c0_8, %c0_9], %11 {strides = array<i32>} : memref<1x32x1681xf32, #tpu.memory_space<vmem>>, vector<1x32x1681xf32>,
    return
  }
  func.func @transform_0(%arg0: i32) -> (i32, i32, i32) {
    %c0_i32 = arith.constant 0 : i32
    %c0_i32_0 = arith.constant 0 : i32
    %c0_i32_1 = arith.constant 0 : i32
    return %arg0, %c0_i32, %c0_i32_0 : i32, i32, i32
  }
  func.func @transform_1(%arg0: i32) -> (i32, i32) {
    %c0_i32 = arith.constant 0 : i32
    %c0_i32_0 = arith.constant 0 : i32
    %c0_i32_1 = arith.constant 0 : i32
    return %c0_i32, %c0_i32_0 : i32, i32
  }
  func.func @transform_2(%arg0: i32) -> (i32, i32) {
    %c0_i32 = arith.constant 0 : i32
    %c0_i32_0 = arith.constant 0 : i32
    %c0_i32_1 = arith.constant 0 : i32
    return %c0_i32, %c0_i32_0 : i32, i32
  }
  func.func @transform_3(%arg0: i32) -> (i32, i32, i32) {
    %c0_i32 = arith.constant 0 : i32
    %c0_i32_0 = arith.constant 0 : i32
    %c0_i32_1 = arith.constant 0 : i32
    return %arg0, %c0_i32, %c0_i32_0 : i32, i32, i32
  }
}

</mosaic_0001>

<llo_original>
// kernel: tpu_custom_call.1
$region0: #{tpu_custom_call.1}
  #allocation0 [shape = 'u32[]', space=smem, size = 0x4, offset = 0x4, fixed_abs, tag = 'smem constant byte address 0x4 - core index']
  #allocation1 [shape = 'u32[144,128]{1,0:T(1,128)}', space=vmem, size = 0x12000, scoped, tag = 'internal scratch']
  %s0 = inlined_call_operand.vmem [shape: f32[2,27,1681], index: 0, kind: input, shape index: {}]
  %s1 = inlined_call_operand.vmem [shape: f32[32,27], index: 1, kind: input, shape index: {}]
  %s2 = inlined_call_operand.vmem [shape: f32[32,1], index: 2, kind: input, shape index: {}]
  %s3 = inlined_call_operand.hbm [shape: f32[2,32,1681], index: 3, kind: output, shape index: {}]
  %s4 = sld [smem:[#allocation0]]
  $region45: #{tpu_custom_call.1} parent=0
    _
  %s6 = ssub.s32 1, %s4
  %s7 = scalar_select 0, %s6, %s4
  $region1: #{tpu_custom_call.1} parent=0
    #allocation2 [shape = 'u8[458752]{0}', space=vmem, size = 0x70000, scoped, tag = 'output window, operand 0']
    #allocation3 [shape = 's32[2]{0}', space=sflag, size = 0x8, scoped, tag = 'scoped memory for tpu_custom_call.1']
    %8 = vsyncpa [#allocation3], 0
    %s9 = scalar_lea.sflag [#allocation3], 1
    %10 = vsyncpa %s9, 0
    loop: start=0, step=1, limit=4
    $region2: #{tpu_custom_call.1} parent=1 // loop_pre_header
      _
    $region3: #{tpu_custom_call.1} parent=1 // loop_header
      %s12 = sphi 0, %s16
      %p13 = scmp.ge.s32.totalorder %s12, 4
      %s22 = sphi 0, %s24
      %s25 = sphi 0, %s22
      %s26 = sphi 0, %s25
      %s42 = sphi 0, %s26
      %s46 = sphi 0, %s46
      %s48 = sphi 0, %s46
      %s49 = sphi 0, %s48
      %s63 = sphi 0, %s49
      %s67 = sphi 0, %s67
      %s69 = sphi 0, %s67
      %s70 = sphi 0, %s69
      %s84 = sphi 0, %s70
      %s90 = sphi 0, %s92
      %s93 = sphi 0, %s90
      %s94 = sphi 0, %s93
      %s110 = sphi 0, %s94
    $region4: #{tpu_custom_call.1} parent=1 // loop_header_branch
      %15 = sbr.rel (%p13) target = $region8
    $region5: #{tpu_custom_call.1} parent=1 // loop_body
      %s17 = ssub.s32 %s12, 1
      %s18 = ssub.s32 %s12, 2
      %s19 = sadd.s32 %s12, 1
      %s20 = ssub.s32 %s12, %s19
      %p21 = scmp.eq.s32.totalorder %s20, 0
      %s23 = sadd.s32 %s22, 1
      %s24 = scalar_select %p21, %s22, %s23
      %p27 = pneg %p21
      %p28 = scmp.eq.s32.totalorder %s12, 1
      %p29 = por %p27, %p28
      %p30 = scmp.ne.s32.totalorder %s22, %s25
      %p31 = scmp.eq.s32.totalorder %s12, 0
      %p32 = por %p30, %p31
      %p33 = scmp.ne.s32.totalorder %s22, %s25
      %p34 = scmp.eq.s32.totalorder %s17, 1
      %p35 = por %p33, %p34
      %p36 = scmp.ne.s32.totalorder %s25, %s26
      %p37 = scmp.eq.s32.totalorder %s17, 0
      %p38 = por %p36, %p37
      %p39 = scmp.ne.s32.totalorder %s25, %s26
      %p40 = scmp.eq.s32.totalorder %s18, 1
      %p41 = por %p39, %p40
      %p43 = scmp.ne.s32.totalorder %s26, %s42
      %p44 = scmp.eq.s32.totalorder %s18, 0
      %p45 = por %p43, %p44
      %s47 = sadd.s32 %s46, 1
      %p50 = scmp.eq.s32.totalorder %s12, 1
      %p51 = scmp.ne.s32.totalorder %s46, %s48
      %p52 = scmp.eq.s32.totalorder %s12, 0
      %p53 = por %p51, %p52
      %p54 = scmp.ne.s32.totalorder %s46, %s48
      %p55 = scmp.eq.s32.totalorder %s17, 1
      %p56 = por %p54, %p55
      %p57 = scmp.ne.s32.totalorder %s48, %s49
      %p58 = scmp.eq.s32.totalorder %s17, 0
      %p59 = por %p57, %p58
      %p60 = scmp.ne.s32.totalorder %s48, %s49
      %p61 = scmp.eq.s32.totalorder %s18, 1
      %p62 = por %p60, %p61
      %p64 = scmp.ne.s32.totalorder %s49, %s63
      %p65 = scmp.eq.s32.totalorder %s18, 0
      %p66 = por %p64, %p65
      %s68 = sadd.s32 %s67, 1
      %p71 = scmp.eq.s32.totalorder %s12, 1
      %p72 = scmp.ne.s32.totalorder %s67, %s69
      %p73 = scmp.eq.s32.totalorder %s12, 0
      %p74 = por %p72, %p73
      %p75 = scmp.ne.s32.totalorder %s67, %s69
      %p76 = scmp.eq.s32.totalorder %s17, 1
      %p77 = por %p75, %p76
      %p78 = scmp.ne.s32.totalorder %s69, %s70
      %p79 = scmp.eq.s32.totalorder %s17, 0
      %p80 = por %p78, %p79
      %p81 = scmp.ne.s32.totalorder %s69, %s70
      %p82 = scmp.eq.s32.totalorder %s18, 1
      %p83 = por %p81, %p82
      %p85 = scmp.ne.s32.totalorder %s70, %s84
      %p86 = scmp.eq.s32.totalorder %s18, 0
      %p87 = por %p85, %p86
      %s88 = ssub.s32 %s12, %s19
      %p89 = scmp.eq.s32.totalorder %s88, 0
      %s91 = sadd.s32 %s90, 1
      %s92 = scalar_select %p89, %s90, %s91
      %p95 = pneg %p89
      %p96 = scmp.eq.s32.totalorder %s12, 1
      %p97 = por %p95, %p96
      %p98 = scmp.ne.s32.totalorder %s90, %s93
      %p99 = scmp.eq.s32.totalorder %s12, 0
      %p100 = por %p98, %p99
      %p101 = scmp.ne.s32.totalorder %s90, %s93
      %p102 = scmp.eq.s32.totalorder %s17, 1
      %p103 = por %p101, %p102
      %p104 = scmp.ne.s32.totalorder %s93, %s94
      %p105 = scmp.eq.s32.totalorder %s17, 0
      %p106 = por %p104, %p105
      %p107 = scmp.ne.s32.totalorder %s93, %s94
      %p108 = scmp.eq.s32.totalorder %s18, 1
      %p109 = por %p107, %p108
      %p111 = scmp.ne.s32.totalorder %s94, %s110
      %p112 = scmp.eq.s32.totalorder %s18, 0
      %p113 = por %p111, %p112
      %p114 = scmp.le.s32.totalorder 1, %s12
      %p115 = scmp.lt.s32.totalorder %s12, 3
      %p116 = pnand %p114, %p115
      %p117 = pneg %p116
      // Predicated region
      $region9: #{tpu_custom_call.1} parent=5 // pred_check
        _
      $region10: #{tpu_custom_call.1} parent=5 // pred_check_branch
        %119 = sbr.rel (%p116) target = $region12
      $region11: #{tpu_custom_call.1} parent=5 // pred_region
        %s120 = ssub.s32 %s12, 1
        // Predicated region
        $region13: #{tpu_custom_call.1} parent=11 // pred_check
          %p121 = pneg %p59
        $region14: #{tpu_custom_call.1} parent=11 // pred_check_branch
          %123 = sbr.rel (%p121) target = $region16
        $region15: #{tpu_custom_call.1} parent=11 // pred_region
          _
        $region16: #{tpu_custom_call.1} parent=11 // pred_fallthru
          _
        // Predicated region
        $region17: #{tpu_custom_call.1} parent=11 // pred_check
          %p124 = pneg %p80
        $region18: #{tpu_custom_call.1} parent=11 // pred_check_branch
          %126 = sbr.rel (%p124) target = $region20
        $region19: #{tpu_custom_call.1} parent=11 // pred_region
          _
        $region20: #{tpu_custom_call.1} parent=11 // pred_fallthru
          _
      $region12: #{tpu_custom_call.1} parent=5 // pred_fallthru
        _
      %p127 = scmp.lt.s32.totalorder %s12, 2
      // Predicated region
      $region21: #{tpu_custom_call.1} parent=5 // pred_check
        %p128 = pneg %p127
      $region22: #{tpu_custom_call.1} parent=5 // pred_check_branch
        %130 = sbr.rel (%p128) target = $region24
      $region23: #{tpu_custom_call.1} parent=5 // pred_region
        // Predicated region
        $region25: #{tpu_custom_call.1} parent=23 // pred_check
          %p131 = pneg %p32
        $region26: #{tpu_custom_call.1} parent=23 // pred_check_branch
          %133 = sbr.rel (%p131) target = $region28
        $region27: #{tpu_custom_call.1} parent=23 // pred_region
          %p134 = scmp.lt.s32.totalorder %s12, 1
          %s135 = scalar_select %p134, %s12, 1
          %s136 = smul.addr %s135, 56
          %s137 = smul.addr %s136, 8
          %s138 = scalar_lea.vmem %s0, %s137
        $region28: #{tpu_custom_call.1} parent=23 // pred_fallthru
          _
      $region24: #{tpu_custom_call.1} parent=5 // pred_fallthru
        _
      %p139 = scmp.le.s32.totalorder 1, %s12
      %p140 = scmp.lt.s32.totalorder %s12, 3
      %p141 = pnand %p139, %p140
      %p142 = pneg %p141
      // Predicated region
      $region29: #{tpu_custom_call.1} parent=5 // pred_check
        _
      $region30: #{tpu_custom_call.1} parent=5 // pred_check_branch
        %144 = sbr.rel (%p141) target = $region32
      $region31: #{tpu_custom_call.1} parent=5 // pred_region
        %s145 = ssub.s32 %s12, 1
        %p146 = scmp.lt.s32.totalorder %s17, 1
        %s147 = scalar_select %p146, %s17, 1
        %s148 = smul.addr %s147, 56
        %s149 = smul.addr %s148, 8
        %s150 = scalar_lea.vmem %s0, %s149
        %p151 = pneg %p38
        %p152 = pneg %p35
        %p153 = pneg %p59
        %p154 = pneg %p56
        %p155 = pneg %p80
        %p156 = pneg %p77
        %p157 = pneg %p106
        %p158 = pneg %p103
        %s159 = sand.u32 %s93, 1
        %s160 = scalar_lea.sflag [#allocation3], %s159
        %s161 = sand.u32 %s93, 1
        %s162 = smul.addr %s161, 448
        %s163 = scalar_lea.vmem [#allocation2], %s162
        %p164 = scmp.lt.s32.totalorder %s17, 1
        %s165 = scalar_select %p164, %s17, 1
        %s166 = smul.addr %s165, 56
        %s167 = smul.addr %s166, 8
        %s168 = scalar_lea.vmem %s0, %s167
        %v169 = vld [vmem:[%s1] sm:$0xff]
        %v170 = vld [vmem:[%s1 + $0x8] sm:$0xff]
        %v171 = vld [vmem:[%s1 + $0x10] sm:$0xff]
        %v172 = vld [vmem:[%s1 + $0x18] sm:$0xff]
        %v173 = vld [vmem:[%s168] sm:$0xff]
        %v174 = vld [vmem:[%s168 + $0x8] sm:$0xff]
        %v175 = vld [vmem:[%s168 + $0x10] sm:$0xff]
        %v176 = vld [vmem:[%s168 + $0x18] sm:$0xff]
        %v177 = vld [vmem:[%s168 + $0x20] sm:$0xff]
        %v178 = vld [vmem:[%s168 + $0x28] sm:$0xff]
        %v179 = vld [vmem:[%s168 + $0x30] sm:$0xff]
        %v180 = vld [vmem:[%s168 + $0x38] sm:$0xff]
        %v181 = vld [vmem:[%s168 + $0x40] sm:$0xff]
        %v182 = vld [vmem:[%s168 + $0x48] sm:$0xff]
        %v183 = vld [vmem:[%s168 + $0x50] sm:$0xff]
        %v184 = vld [vmem:[%s168 + $0x58] sm:$0xff]
        %v185 = vld [vmem:[%s168 + $0x60] sm:$0xff]
        %v186 = vld [vmem:[%s168 + $0x68] sm:$0xff]
        %v187 = vld [vmem:[%s168 + $0x70] sm:$0xff]
        %v188 = vld [vmem:[%s168 + $0x78] sm:$0xff]
        %v189 = vld [vmem:[%s168 + $0x80] sm:$0xff]
        %v190 = vld [vmem:[%s168 + $0x88] sm:$0xff]
        %v191 = vld [vmem:[%s168 + $0x90] sm:$0xff]
        %v192 = vld [vmem:[%s168 + $0x98] sm:$0xff]
        %v193 = vld [vmem:[%s168 + $0xa0] sm:$0xff]
        %v194 = vld [vmem:[%s168 + $0xa8] sm:$0xff]
        %v195 = vld [vmem:[%s168 + $0xb0] sm:$0xff]
        %v196 = vld [vmem:[%s168 + $0xb8] sm:$0xff]
        %v197 = vld [vmem:[%s168 + $0xc0] sm:$0xff]
        %v198 = vld [vmem:[%s168 + $0xc8] sm:$0xff]
        %v199 = vld [vmem:[%s168 + $0xd0] sm:$0xff]
        %v200 = vld [vmem:[%s168 + $0xd8] sm:$0xff]
        %v201 = vld [vmem:[%s168 + $0xe0] sm:$0xff]
        %v202 = vld [vmem:[%s168 + $0xe8] sm:$0xff]
        %v203 = vld [vmem:[%s168 + $0xf0] sm:$0xff]
        %v204 = vld [vmem:[%s168 + $0xf8] sm:$0xff]
        %v205 = vld [vmem:[%s168 + $0x100] sm:$0xff]
        %v206 = vld [vmem:[%s168 + $0x108] sm:$0xff]
        %v207 = vld [vmem:[%s168 + $0x110] sm:$0xff]
        %v208 = vld [vmem:[%s168 + $0x118] sm:$0xff]
        %v209 = vld [vmem:[%s168 + $0x120] sm:$0xff]
        %v210 = vld [vmem:[%s168 + $0x128] sm:$0xff]
        %v211 = vld [vmem:[%s168 + $0x130] sm:$0xff]
        %v212 = vld [vmem:[%s168 + $0x138] sm:$0xff]
        %v213 = vld [vmem:[%s168 + $0x140] sm:$0xff]
        %v214 = vld [vmem:[%s168 + $0x148] sm:$0xff]
        %v215 = vld [vmem:[%s168 + $0x150] sm:$0x7]
        %v216 = vld [vmem:[%s168 + $0x158] sm:$0x7]
        %v217 = vld [vmem:[%s168 + $0x160] sm:$0x7]
        %v218 = vld [vmem:[%s168 + $0x168] sm:$0x7]
        %v219 = vld [vmem:[%s168 + $0x170] sm:$0x7]
        %v220 = vld [vmem:[%s168 + $0x178] sm:$0x7]
        %v221 = vld [vmem:[%s168 + $0x180] sm:$0x7]
        %v222 = vld [vmem:[%s168 + $0x188] sm:$0x7]
        %v223 = vld [vmem:[%s168 + $0x190] sm:$0x7]
        %v224 = vld [vmem:[%s168 + $0x198] sm:$0x7]
        %v225 = vld [vmem:[%s168 + $0x1a0] sm:$0x7]
        %v226 = vld [vmem:[%s168 + $0x1a8] sm:$0x7]
        %v227 = vld [vmem:[%s168 + $0x1b0] sm:$0x7]
        %v228 = vld [vmem:[%s168 + $0x1b8] sm:$0x7]
        %v229 = vld [vmem:[%s2] sm:$0xff]
        %v230 = vld [vmem:[%s2 + $0x8] sm:$0xff]
        %v231 = vld [vmem:[%s2 + $0x10] sm:$0xff]
        %v232 = vld [vmem:[%s2 + $0x18] sm:$0xff]
        %234 = vset.pattern.permute.xlu0 0
        %235 = vperm.xlu0 %234, %v229
        %v236 = vpop.permute.xlu0 %235
        %239 = vset.pattern.permute.xlu0 0
        %240 = vperm.xlu0 %239, %v230
        %v241 = vpop.permute.xlu0 %240
        %244 = vset.pattern.permute.xlu0 0
        %245 = vperm.xlu0 %244, %v231
        %v246 = vpop.permute.xlu0 %245
        %249 = vset.pattern.permute.xlu0 0
        %250 = vperm.xlu0 %249, %v232
        %v251 = vpop.permute.xlu0 %250
        %vm253 = vcmask 220160
        %v255 = vsel %vm253, %v169, 0
        %v258 = vsel %vm253, %v170, 0
        %v261 = vsel %vm253, %v171, 0
        %v264 = vsel %vm253, %v172, 0
        %vm266 = vcmask 1042432
        %v268 = vsel %vm266, %v215, 0
        %v271 = vsel %vm266, %v216, 0
        %v274 = vsel %vm266, %v217, 0
        %v277 = vsel %vm266, %v218, 0
        %v280 = vsel %vm266, %v219, 0
        %v283 = vsel %vm266, %v220, 0
        %v286 = vsel %vm266, %v221, 0
        %v289 = vsel %vm266, %v222, 0
        %v292 = vsel %vm266, %v223, 0
        %v295 = vsel %vm266, %v224, 0
        %v298 = vsel %vm266, %v225, 0
        %v301 = vsel %vm266, %v226, 0
        %v304 = vsel %vm266, %v227, 0
        %v307 = vsel %vm266, %v228, 0
        %309 = vmatprep.subr.mxu0 %v174
        %310 = vmatpush1.msra.mxu0 %v173
        %311 = vmatprep.subr.mxu0 %v188
        %312 = vmatpush1.msra.mxu0 %v187
        %313 = vmatprep.subr.mxu0 %v202
        %314 = vmatpush1.msra.mxu0 %v201
        %315 = vmatprep.subr.mxu0 %v271
        %316 = vmatpush1.msra.mxu0 %v268
        %317 = vmatprep.subr.mxu0 0.0
        %318 = vmatpush1.msra.mxu0 0.0
        %319 = vmatprep.subr.mxu0 0.0
        %320 = vmatpush1.msra.mxu0 0.0
        %321 = vmatprep.subr.mxu0 0.0
        %322 = vmatpush1.msra.mxu0 0.0
        %323 = vmatprep.subr.mxu0 0.0
        %324 = vmatpush1.msra.mxu0 0.0
        %325 = vmatprep.subr.mxu0 0.0
        %326 = vmatpush1.msra.mxu0 0.0
        %327 = vmatprep.subr.mxu0 0.0
        %328 = vmatpush1.msra.mxu0 0.0
        %329 = vmatprep.subr.mxu0 0.0
        %330 = vmatpush1.msra.mxu0 0.0
        %331 = vmatprep.subr.mxu0 0.0
        %332 = vmatpush1.msra.mxu0 0.0
        %333 = vmatprep.subr.mxu0 0.0
        %334 = vmatpush1.msra.mxu0 0.0
        %335 = vmatprep.subr.mxu0 0.0
        %336 = vmatpush1.msra.mxu0 0.0
        %337 = vmatprep.subr.mxu0 0.0
        %338 = vmatpush1.msra.mxu0 0.0
        %339 = vmatprep.subr.mxu0 0.0
        %340 = vmatpush1.msra.mxu0 0.0
        %341 = vmatprep.subr.mxu0 0.0
        %342 = vmatpush1.msra.mxu0 0.0
        %343 = vmatprep.subr.mxu0 0.0
        %344 = vmatpush1.msra.mxu0 0.0
        %345 = vmatprep.subr.mxu0 0.0
        %346 = vmatpush1.msra.mxu0 0.0
        %347 = vmatprep.subr.mxu0 0.0
        %348 = vmatpush1.msra.mxu0 0.0
        %349 = vmatprep.subr.mxu0 0.0
        %350 = vmatpush1.msra.mxu0 0.0
        %351 = vmatprep.subr.mxu0 0.0
        %352 = vmatpush1.msra.mxu0 0.0
        %353 = vmatprep.subr.mxu0 0.0
        %354 = vmatpush1.msra.mxu0 0.0
        %355 = vmatprep.subr.mxu0 0.0
        %356 = vmatpush1.msra.mxu0 0.0
        %357 = vmatprep.subr.mxu0 0.0
        %358 = vmatpush1.msra.mxu0 0.0
        %359 = vmatprep.subr.mxu0 0.0
        %360 = vmatpush1.msra.mxu0 0.0
        %361 = vmatprep.subr.mxu0 0.0
        %362 = vmatpush1.msra.mxu0 0.0
        %363 = vmatprep.subr.mxu0 0.0
        %364 = vmatpush1.msra.mxu0 0.0
        %365 = vmatprep.subr.mxu0 0.0
        %366 = vmatpush1.msra.mxu0 0.0
        %367 = vmatprep.subr.mxu0 0.0
        %368 = vmatpush1.msra.mxu0 0.0
        %369 = vmatprep.subr.mxu0 0.0
        %370 = vmatpush1.msra.mxu0 0.0
        %371 = vmatprep.subr.mxu0 0.0
        %372 = vmatpush1.msra.mxu0 0.0
        %373 = vmatprep.mubr.f32.mxu0 0.0
        %374 = vmatmul.mubr.f32.gmra.mrb[0].mxu0 %v255
        %v375 = vpop.f32.mrb[0].mxu0
        %v376 = vadd.f32 %v236, %v375
        %v377 = vpop.f32.mrb[0].mxu0
        %v378 = vadd.f32 %v236, %v377
        %379 = vmatprep.mubr.f32.mxu0 0.0
        %380 = vmatmul.mubr.f32.gmra.mrb[0].mxu0 %v258
        %v381 = vpop.f32.mrb[0].mxu0
        %v382 = vadd.f32 %v241, %v381
        %v383 = vpop.f32.mrb[0].mxu0
        %v384 = vadd.f32 %v241, %v383
        %385 = vmatprep.mubr.f32.mxu0 0.0
        %386 = vmatmul.mubr.f32.gmra.mrb[0].mxu0 %v261
        %v387 = vpop.f32.mrb[0].mxu0
        %v388 = vadd.f32 %v246, %v387
        %v389 = vpop.f32.mrb[0].mxu0
        %v390 = vadd.f32 %v246, %v389
        %391 = vmatprep.mubr.f32.mxu0 0.0
        %392 = vmatmul.mubr.f32.gmra.mrb[0].mxu0 %v264
        %v393 = vpop.f32.mrb[0].mxu0
        %v394 = vadd.f32 %v251, %v393
        %v395 = vpop.f32.mrb[0].mxu0
        %v396 = vadd.f32 %v251, %v395
        %397 = vdwg.mxu0
        %398 = vmatprep.subr.mxu0 %v176
        %399 = vmatpush1.msra.mxu0 %v175
        %400 = vmatprep.subr.mxu0 %v190
        %401 = vmatpush1.msra.mxu0 %v189
        %402 = vmatprep.subr.mxu0 %v204
        %403 = vmatpush1.msra.mxu0 %v203
        %404 = vmatprep.subr.mxu0 %v277
        %405 = vmatpush1.msra.mxu0 %v274
        %406 = vmatprep.subr.mxu0 0.0
        %407 = vmatpush1.msra.mxu0 0.0
        %408 = vmatprep.subr.mxu0 0.0
        %409 = vmatpush1.msra.mxu0 0.0
        %410 = vmatprep.subr.mxu0 0.0
        %411 = vmatpush1.msra.mxu0 0.0
        %412 = vmatprep.subr.mxu0 0.0
        %413 = vmatpush1.msra.mxu0 0.0
        %414 = vmatprep.subr.mxu0 0.0
        %415 = vmatpush1.msra.mxu0 0.0
        %416 = vmatprep.subr.mxu0 0.0
        %417 = vmatpush1.msra.mxu0 0.0
        %418 = vmatprep.subr.mxu0 0.0
        %419 = vmatpush1.msra.mxu0 0.0
        %420 = vmatprep.subr.mxu0 0.0
        %421 = vmatpush1.msra.mxu0 0.0
        %422 = vmatprep.subr.mxu0 0.0
        %423 = vmatpush1.msra.mxu0 0.0
        %424 = vmatprep.subr.mxu0 0.0
        %425 = vmatpush1.msra.mxu0 0.0
        %426 = vmatprep.subr.mxu0 0.0
        %427 = vmatpush1.msra.mxu0 0.0
        %428 = vmatprep.subr.mxu0 0.0
        %429 = vmatpush1.msra.mxu0 0.0
        %430 = vmatprep.subr.mxu0 0.0
        %431 = vmatpush1.msra.mxu0 0.0
        %432 = vmatprep.subr.mxu0 0.0
        %433 = vmatpush1.msra.mxu0 0.0
        %434 = vmatprep.subr.mxu0 0.0
        %435 = vmatpush1.msra.mxu0 0.0
        %436 = vmatprep.subr.mxu0 0.0
        %437 = vmatpush1.msra.mxu0 0.0
        %438 = vmatprep.subr.mxu0 0.0
        %439 = vmatpush1.msra.mxu0 0.0
        %440 = vmatprep.subr.mxu0 0.0
        %441 = vmatpush1.msra.mxu0 0.0
        %442 = vmatprep.subr.mxu0 0.0
        %443 = vmatpush1.msra.mxu0 0.0
        %444 = vmatprep.subr.mxu0 0.0
        %445 = vmatpush1.msra.mxu0 0.0
        %446 = vmatprep.subr.mxu0 0.0
        %447 = vmatpush1.msra.mxu0 0.0
        %448 = vmatprep.subr.mxu0 0.0
        %449 = vmatpush1.msra.mxu0 0.0
        %450 = vmatprep.subr.mxu0 0.0
        %451 = vmatpush1.msra.mxu0 0.0
        %452 = vmatprep.subr.mxu0 0.0
        %453 = vmatpush1.msra.mxu0 0.0
        %454 = vmatprep.subr.mxu0 0.0
        %455 = vmatpush1.msra.mxu0 0.0
        %456 = vmatprep.subr.mxu0 0.0
        %457 = vmatpush1.msra.mxu0 0.0
        %458 = vmatprep.subr.mxu0 0.0
        %459 = vmatpush1.msra.mxu0 0.0
        %460 = vmatprep.subr.mxu0 0.0
        %461 = vmatpush1.msra.mxu0 0.0
        %462 = vmatprep.mubr.f32.mxu0 0.0
        %463 = vmatmul.mubr.f32.gmra.mrb[0].mxu0 %v255
        %v464 = vpop.f32.mrb[0].mxu0
        %v465 = vadd.f32 %v236, %v464
        %v466 = vpop.f32.mrb[0].mxu0
        %v467 = vadd.f32 %v236, %v466
        %468 = vmatprep.mubr.f32.mxu0 0.0
        %469 = vmatmul.mubr.f32.gmra.mrb[0].mxu0 %v258
        %v470 = vpop.f32.mrb[0].mxu0
        %v471 = vadd.f32 %v241, %v470
        %v472 = vpop.f32.mrb[0].mxu0
        %v473 = vadd.f32 %v241, %v472
        %474 = vmatprep.mubr.f32.mxu0 0.0
        %475 = vmatmul.mubr.f32.gmra.mrb[0].mxu0 %v261
        %v476 = vpop.f32.mrb[0].mxu0
        %v477 = vadd.f32 %v246, %v476
        %v478 = vpop.f32.mrb[0].mxu0
        %v479 = vadd.f32 %v246, %v478
        %480 = vmatprep.mubr.f32.mxu0 0.0
        %481 = vmatmul.mubr.f32.gmra.mrb[0].mxu0 %v264
        %v482 = vpop.f32.mrb[0].mxu0
        %v483 = vadd.f32 %v251, %v482
        %v484 = vpop.f32.mrb[0].mxu0
        %v485 = vadd.f32 %v251, %v484
        %486 = vdwg.mxu0
        %487 = vmatprep.subr.mxu0 %v178
        %488 = vmatpush1.msra.mxu0 %v177
        %489 = vmatprep.subr.mxu0 %v192
        %490 = vmatpush1.msra.mxu0 %v191
        %491 = vmatprep.subr.mxu0 %v206
        %492 = vmatpush1.msra.mxu0 %v205
        %493 = vmatprep.subr.mxu0 %v283
        %494 = vmatpush1.msra.mxu0 %v280
        %495 = vmatprep.subr.mxu0 0.0
        %496 = vmatpush1.msra.mxu0 0.0
        %497 = vmatprep.subr.mxu0 0.0
        %498 = vmatpush1.msra.mxu0 0.0
        %499 = vmatprep.subr.mxu0 0.0
        %500 = vmatpush1.msra.mxu0 0.0
        %501 = vmatprep.subr.mxu0 0.0
        %502 = vmatpush1.msra.mxu0 0.0
        %503 = vmatprep.subr.mxu0 0.0
        %504 = vmatpush1.msra.mxu0 0.0
        %505 = vmatprep.subr.mxu0 0.0
        %506 = vmatpush1.msra.mxu0 0.0
        %507 = vmatprep.subr.mxu0 0.0
        %508 = vmatpush1.msra.mxu0 0.0
        %509 = vmatprep.subr.mxu0 0.0
        %510 = vmatpush1.msra.mxu0 0.0
        %511 = vmatprep.subr.mxu0 0.0
        %512 = vmatpush1.msra.mxu0 0.0
        %513 = vmatprep.subr.mxu0 0.0
        %514 = vmatpush1.msra.mxu0 0.0
        %515 = vmatprep.subr.mxu0 0.0
        %516 = vmatpush1.msra.mxu0 0.0
        %517 = vmatprep.subr.mxu0 0.0
        %518 = vmatpush1.msra.mxu0 0.0
        %519 = vmatprep.subr.mxu0 0.0
        %520 = vmatpush1.msra.mxu0 0.0
        %521 = vmatprep.subr.mxu0 0.0
        %522 = vmatpush1.msra.mxu0 0.0
        %523 = vmatprep.subr.mxu0 0.0
        %524 = vmatpush1.msra.mxu0 0.0
        %525 = vmatprep.subr.mxu0 0.0
        %526 = vmatpush1.msra.mxu0 0.0
        %527 = vmatprep.subr.mxu0 0.0
        %528 = vmatpush1.msra.mxu0 0.0
        %529 = vmatprep.subr.mxu0 0.0
        %530 = vmatpush1.msra.mxu0 0.0
        %531 = vmatprep.subr.mxu0 0.0
        %532 = vmatpush1.msra.mxu0 0.0
        %533 = vmatprep.subr.mxu0 0.0
        %534 = vmatpush1.msra.mxu0 0.0
        %535 = vmatprep.subr.mxu0 0.0
        %536 = vmatpush1.msra.mxu0 0.0
        %537 = vmatprep.subr.mxu0 0.0
        %538 = vmatpush1.msra.mxu0 0.0
        %539 = vmatprep.subr.mxu0 0.0
        %540 = vmatpush1.msra.mxu0 0.0
        %541 = vmatprep.subr.mxu0 0.0
        %542 = vmatpush1.msra.mxu0 0.0
        %543 = vmatprep.subr.mxu0 0.0
        %544 = vmatpush1.msra.mxu0 0.0
        %545 = vmatprep.subr.mxu0 0.0
        %546 = vmatpush1.msra.mxu0 0.0
        %547 = vmatprep.subr.mxu0 0.0
        %548 = vmatpush1.msra.mxu0 0.0
        %549 = vmatprep.subr.mxu0 0.0
        %550 = vmatpush1.msra.mxu0 0.0
        %551 = vmatprep.mubr.f32.mxu0 0.0
        %552 = vmatmul.mubr.f32.gmra.mrb[0].mxu0 %v255
        %v553 = vpop.f32.mrb[0].mxu0
        %v554 = vadd.f32 %v236, %v553
        %v555 = vpop.f32.mrb[0].mxu0
        %v556 = vadd.f32 %v236, %v555
        %557 = vmatprep.mubr.f32.mxu0 0.0
        %558 = vmatmul.mubr.f32.gmra.mrb[0].mxu0 %v258
        %v559 = vpop.f32.mrb[0].mxu0
        %v560 = vadd.f32 %v241, %v559
        %v561 = vpop.f32.mrb[0].mxu0
        %v562 = vadd.f32 %v241, %v561
        %563 = vmatprep.mubr.f32.mxu0 0.0
        %564 = vmatmul.mubr.f32.gmra.mrb[0].mxu0 %v261
        %v565 = vpop.f32.mrb[0].mxu0
        %v566 = vadd.f32 %v246, %v565
        %v567 = vpop.f32.mrb[0].mxu0
        %v568 = vadd.f32 %v246, %v567
        %569 = vmatprep.mubr.f32.mxu0 0.0
        %570 = vmatmul.mubr.f32.gmra.mrb[0].mxu0 %v264
        %v571 = vpop.f32.mrb[0].mxu0
        %v572 = vadd.f32 %v251, %v571
        %v573 = vpop.f32.mrb[0].mxu0
        %v574 = vadd.f32 %v251, %v573
        %575 = vdwg.mxu0
        %576 = vmatprep.subr.mxu0 %v180
        %577 = vmatpush1.msra.mxu0 %v179
        %578 = vmatprep.subr.mxu0 %v194
        %579 = vmatpush1.msra.mxu0 %v193
        %580 = vmatprep.subr.mxu0 %v208
        %581 = vmatpush1.msra.mxu0 %v207
        %582 = vmatprep.subr.mxu0 %v289
        %583 = vmatpush1.msra.mxu0 %v286
        %584 = vmatprep.subr.mxu0 0.0
        %585 = vmatpush1.msra.mxu0 0.0
        %586 = vmatprep.subr.mxu0 0.0
        %587 = vmatpush1.msra.mxu0 0.0
        %588 = vmatprep.subr.mxu0 0.0
        %589 = vmatpush1.msra.mxu0 0.0
        %590 = vmatprep.subr.mxu0 0.0
        %591 = vmatpush1.msra.mxu0 0.0
        %592 = vmatprep.subr.mxu0 0.0
        %593 = vmatpush1.msra.mxu0 0.0
        %594 = vmatprep.subr.mxu0 0.0
        %595 = vmatpush1.msra.mxu0 0.0
        %596 = vmatprep.subr.mxu0 0.0
        %597 = vmatpush1.msra.mxu0 0.0
        %598 = vmatprep.subr.mxu0 0.0
        %599 = vmatpush1.msra.mxu0 0.0
        %600 = vmatprep.subr.mxu0 0.0
        %601 = vmatpush1.msra.mxu0 0.0
        %602 = vmatprep.subr.mxu0 0.0
        %603 = vmatpush1.msra.mxu0 0.0
        %604 = vmatprep.subr.mxu0 0.0
        %605 = vmatpush1.msra.mxu0 0.0
        %606 = vmatprep.subr.mxu0 0.0
        %607 = vmatpush1.msra.mxu0 0.0
        %608 = vmatprep.subr.mxu0 0.0
        %609 = vmatpush1.msra.mxu0 0.0
        %610 = vmatprep.subr.mxu0 0.0
        %611 = vmatpush1.msra.mxu0 0.0
        %612 = vmatprep.subr.mxu0 0.0
        %613 = vmatpush1.msra.mxu0 0.0
        %614 = vmatprep.subr.mxu0 0.0
        %615 = vmatpush1.msra.mxu0 0.0
        %616 = vmatprep.subr.mxu0 0.0
        %617 = vmatpush1.msra.mxu0 0.0
        %618 = vmatprep.subr.mxu0 0.0
        %619 = vmatpush1.msra.mxu0 0.0
        %620 = vmatprep.subr.mxu0 0.0
        %621 = vmatpush1.msra.mxu0 0.0
        %622 = vmatprep.subr.mxu0 0.0
        %623 = vmatpush1.msra.mxu0 0.0
        %624 = vmatprep.subr.mxu0 0.0
        %625 = vmatpush1.msra.mxu0 0.0
        %626 = vmatprep.subr.mxu0 0.0
        %627 = vmatpush1.msra.mxu0 0.0
        %628 = vmatprep.subr.mxu0 0.0
        %629 = vmatpush1.msra.mxu0 0.0
        %630 = vmatprep.subr.mxu0 0.0
        %631 = vmatpush1.msra.mxu0 0.0
        %632 = vmatprep.subr.mxu0 0.0
        %633 = vmatpush1.msra.mxu0 0.0
        %634 = vmatprep.subr.mxu0 0.0
        %635 = vmatpush1.msra.mxu0 0.0
        %636 = vmatprep.subr.mxu0 0.0
        %637 = vmatpush1.msra.mxu0 0.0
        %638 = vmatprep.subr.mxu0 0.0
        %639 = vmatpush1.msra.mxu0 0.0
        %640 = vmatprep.mubr.f32.mxu0 0.0
        %641 = vmatmul.mubr.f32.gmra.mrb[0].mxu0 %v255
        %v642 = vpop.f32.mrb[0].mxu0
        %v643 = vadd.f32 %v236, %v642
        %v644 = vpop.f32.mrb[0].mxu0
        %v645 = vadd.f32 %v236, %v644
        %646 = vmatprep.mubr.f32.mxu0 0.0
        %647 = vmatmul.mubr.f32.gmra.mrb[0].mxu0 %v258
        %v648 = vpop.f32.mrb[0].mxu0
        %v649 = vadd.f32 %v241, %v648
        %v650 = vpop.f32.mrb[0].mxu0
        %v651 = vadd.f32 %v241, %v650
        %652 = vmatprep.mubr.f32.mxu0 0.0
        %653 = vmatmul.mubr.f32.gmra.mrb[0].mxu0 %v261
        %v654 = vpop.f32.mrb[0].mxu0
        %v655 = vadd.f32 %v246, %v654
        %v656 = vpop.f32.mrb[0].mxu0
        %v657 = vadd.f32 %v246, %v656
        %658 = vmatprep.mubr.f32.mxu0 0.0
        %659 = vmatmul.mubr.f32.gmra.mrb[0].mxu0 %v264
        %v660 = vpop.f32.mrb[0].mxu0
        %v661 = vadd.f32 %v251, %v660
        %v662 = vpop.f32.mrb[0].mxu0
        %v663 = vadd.f32 %v251, %v662
        %664 = vdwg.mxu0
        %665 = vmatprep.subr.mxu0 %v182
        %666 = vmatpush1.msra.mxu0 %v181
        %667 = vmatprep.subr.mxu0 %v196
        %668 = vmatpush1.msra.mxu0 %v195
        %669 = vmatprep.subr.mxu0 %v210
        %670 = vmatpush1.msra.mxu0 %v209
        %671 = vmatprep.subr.mxu0 %v295
        %672 = vmatpush1.msra.mxu0 %v292
        %673 = vmatprep.subr.mxu0 0.0
        %674 = vmatpush1.msra.mxu0 0.0
        %675 = vmatprep.subr.mxu0 0.0
        %676 = vmatpush1.msra.mxu0 0.0
        %677 = vmatprep.subr.mxu0 0.0
        %678 = vmatpush1.msra.mxu0 0.0
        %679 = vmatprep.subr.mxu0 0.0
        %680 = vmatpush1.msra.mxu0 0.0
        %681 = vmatprep.subr.mxu0 0.0
        %682 = vmatpush1.msra.mxu0 0.0
        %683 = vmatprep.subr.mxu0 0.0
        %684 = vmatpush1.msra.mxu0 0.0
        %685 = vmatprep.subr.mxu0 0.0
        %686 = vmatpush1.msra.mxu0 0.0
        %687 = vmatprep.subr.mxu0 0.0
        %688 = vmatpush1.msra.mxu0 0.0
        %689 = vmatprep.subr.mxu0 0.0
        %690 = vmatpush1.msra.mxu0 0.0
        %691 = vmatprep.subr.mxu0 0.0
        %692 = vmatpush1.msra.mxu0 0.0
        %693 = vmatprep.subr.mxu0 0.0
        %694 = vmatpush1.msra.mxu0 0.0
        %695 = vmatprep.subr.mxu0 0.0
        %696 = vmatpush1.msra.mxu0 0.0
        %697 = vmatprep.subr.mxu0 0.0
        %698 = vmatpush1.msra.mxu0 0.0
        %699 = vmatprep.subr.mxu0 0.0
        %700 = vmatpush1.msra.mxu0 0.0
        %701 = vmatprep.subr.mxu0 0.0
        %702 = vmatpush1.msra.mxu0 0.0
        %703 = vmatprep.subr.mxu0 0.0
        %704 = vmatpush1.msra.mxu0 0.0
        %705 = vmatprep.subr.mxu0 0.0
        %706 = vmatpush1.msra.mxu0 0.0
        %707 = vmatprep.subr.mxu0 0.0
        %708 = vmatpush1.msra.mxu0 0.0
        %709 = vmatprep.subr.mxu0 0.0
        %710 = vmatpush1.msra.mxu0 0.0
        %711 = vmatprep.subr.mxu0 0.0
        %712 = vmatpush1.msra.mxu0 0.0
        %713 = vmatprep.subr.mxu0 0.0
        %714 = vmatpush1.msra.mxu0 0.0
        %715 = vmatprep.subr.mxu0 0.0
        %716 = vmatpush1.msra.mxu0 0.0
        %717 = vmatprep.subr.mxu0 0.0
        %718 = vmatpush1.msra.mxu0 0.0
        %719 = vmatprep.subr.mxu0 0.0
        %720 = vmatpush1.msra.mxu0 0.0
        %721 = vmatprep.subr.mxu0 0.0
        %722 = vmatpush1.msra.mxu0 0.0
        %723 = vmatprep.subr.mxu0 0.0
        %724 = vmatpush1.msra.mxu0 0.0
        %725 = vmatprep.subr.mxu0 0.0
        %726 = vmatpush1.msra.mxu0 0.0
        %727 = vmatprep.subr.mxu0 0.0
        %728 = vmatpush1.msra.mxu0 0.0
        %729 = vmatprep.mubr.f32.mxu0 0.0
        %730 = vmatmul.mubr.f32.gmra.mrb[0].mxu0 %v255
        %v731 = vpop.f32.mrb[0].mxu0
        %v732 = vadd.f32 %v236, %v731
        %v733 = vpop.f32.mrb[0].mxu0
        %v734 = vadd.f32 %v236, %v733
        %735 = vmatprep.mubr.f32.mxu0 0.0
        %736 = vmatmul.mubr.f32.gmra.mrb[0].mxu0 %v258
        %v737 = vpop.f32.mrb[0].mxu0
        %v738 = vadd.f32 %v241, %v737
        %v739 = vpop.f32.mrb[0].mxu0
        %v740 = vadd.f32 %v241, %v739
        %741 = vmatprep.mubr.f32.mxu0 0.0
        %742 = vmatmul.mubr.f32.gmra.mrb[0].mxu0 %v261
        %v743 = vpop.f32.mrb[0].mxu0
        %v744 = vadd.f32 %v246, %v743
        %v745 = vpop.f32.mrb[0].mxu0
        %v746 = vadd.f32 %v246, %v745
        %747 = vmatprep.mubr.f32.mxu0 0.0
        %748 = vmatmul.mubr.f32.gmra.mrb[0].mxu0 %v264
        %v749 = vpop.f32.mrb[0].mxu0
        %v750 = vadd.f32 %v251, %v749
        %v751 = vpop.f32.mrb[0].mxu0
        %v752 = vadd.f32 %v251, %v751
        %753 = vdwg.mxu0
        %754 = vmatprep.subr.mxu0 %v184
        %755 = vmatpush1.msra.mxu0 %v183
        %756 = vmatprep.subr.mxu0 %v198
        %757 = vmatpush1.msra.mxu0 %v197
        %758 = vmatprep.subr.mxu0 %v212
        %759 = vmatpush1.msra.mxu0 %v211
        %760 = vmatprep.subr.mxu0 %v301
        %761 = vmatpush1.msra.mxu0 %v298
        %762 = vmatprep.subr.mxu0 0.0
        %763 = vmatpush1.msra.mxu0 0.0
        %764 = vmatprep.subr.mxu0 0.0
        %765 = vmatpush1.msra.mxu0 0.0
        %766 = vmatprep.subr.mxu0 0.0
        %767 = vmatpush1.msra.mxu0 0.0
        %768 = vmatprep.subr.mxu0 0.0
        %769 = vmatpush1.msra.mxu0 0.0
        %770 = vmatprep.subr.mxu0 0.0
        %771 = vmatpush1.msra.mxu0 0.0
        %772 = vmatprep.subr.mxu0 0.0
        %773 = vmatpush1.msra.mxu0 0.0
        %774 = vmatprep.subr.mxu0 0.0
        %775 = vmatpush1.msra.mxu0 0.0
        %776 = vmatprep.subr.mxu0 0.0
        %777 = vmatpush1.msra.mxu0 0.0
        %778 = vmatprep.subr.mxu0 0.0
        %779 = vmatpush1.msra.mxu0 0.0
        %780 = vmatprep.subr.mxu0 0.0
        %781 = vmatpush1.msra.mxu0 0.0
        %782 = vmatprep.subr.mxu0 0.0
        %783 = vmatpush1.msra.mxu0 0.0
        %784 = vmatprep.subr.mxu0 0.0
        %785 = vmatpush1.msra.mxu0 0.0
        %786 = vmatprep.subr.mxu0 0.0
        %787 = vmatpush1.msra.mxu0 0.0
        %788 = vmatprep.subr.mxu0 0.0
        %789 = vmatpush1.msra.mxu0 0.0
        %790 = vmatprep.subr.mxu0 0.0
        %791 = vmatpush1.msra.mxu0 0.0
        %792 = vmatprep.subr.mxu0 0.0
        %793 = vmatpush1.msra.mxu0 0.0
        %794 = vmatprep.subr.mxu0 0.0
        %795 = vmatpush1.msra.mxu0 0.0
        %796 = vmatprep.subr.mxu0 0.0
        %797 = vmatpush1.msra.mxu0 0.0
        %798 = vmatprep.subr.mxu0 0.0
        %799 = vmatpush1.msra.mxu0 0.0
        %800 = vmatprep.subr.mxu0 0.0
        %801 = vmatpush1.msra.mxu0 0.0
        %802 = vmatprep.subr.mxu0 0.0
        %803 = vmatpush1.msra.mxu0 0.0
        %804 = vmatprep.subr.mxu0 0.0
        %805 = vmatpush1.msra.mxu0 0.0
        %806 = vmatprep.subr.mxu0 0.0
        %807 = vmatpush1.msra.mxu0 0.0
        %808 = vmatprep.subr.mxu0 0.0
        %809 = vmatpush1.msra.mxu0 0.0
        %810 = vmatprep.subr.mxu0 0.0
        %811 = vmatpush1.msra.mxu0 0.0
        %812 = vmatprep.subr.mxu0 0.0
        %813 = vmatpush1.msra.mxu0 0.0
        %814 = vmatprep.subr.mxu0 0.0
        %815 = vmatpush1.msra.mxu0 0.0
        %816 = vmatprep.subr.mxu0 0.0
        %817 = vmatpush1.msra.mxu0 0.0
        %818 = vmatprep.mubr.f32.mxu0 0.0
        %819 = vmatmul.mubr.f32.gmra.mrb[0].mxu0 %v255
        %v820 = vpop.f32.mrb[0].mxu0
        %v821 = vadd.f32 %v236, %v820
        %v822 = vpop.f32.mrb[0].mxu0
        %v823 = vadd.f32 %v236, %v822
        %824 = vmatprep.mubr.f32.mxu0 0.0
        %825 = vmatmul.mubr.f32.gmra.mrb[0].mxu0 %v258
        %v826 = vpop.f32.mrb[0].mxu0
        %v827 = vadd.f32 %v241, %v826
        %v828 = vpop.f32.mrb[0].mxu0
        %v829 = vadd.f32 %v241, %v828
        %830 = vmatprep.mubr.f32.mxu0 0.0
        %831 = vmatmul.mubr.f32.gmra.mrb[0].mxu0 %v261
        %v832 = vpop.f32.mrb[0].mxu0
        %v833 = vadd.f32 %v246, %v832
        %v834 = vpop.f32.mrb[0].mxu0
        %v835 = vadd.f32 %v246, %v834
        %836 = vmatprep.mubr.f32.mxu0 0.0
        %837 = vmatmul.mubr.f32.gmra.mrb[0].mxu0 %v264
        %v838 = vpop.f32.mrb[0].mxu0
        %v839 = vadd.f32 %v251, %v838
        %v840 = vpop.f32.mrb[0].mxu0
        %v841 = vadd.f32 %v251, %v840
        %842 = vdwg.mxu0
        %843 = vmatprep.subr.mxu0 %v186
        %844 = vmatpush1.msra.mxu0 %v185
        %845 = vmatprep.subr.mxu0 %v200
        %846 = vmatpush1.msra.mxu0 %v199
        %847 = vmatprep.subr.mxu0 %v214
        %848 = vmatpush1.msra.mxu0 %v213
        %849 = vmatprep.subr.mxu0 %v307
        %850 = vmatpush1.msra.mxu0 %v304
        %851 = vmatprep.subr.mxu0 0.0
        %852 = vmatpush1.msra.mxu0 0.0
        %853 = vmatprep.subr.mxu0 0.0
        %854 = vmatpush1.msra.mxu0 0.0
        %855 = vmatprep.subr.mxu0 0.0
        %856 = vmatpush1.msra.mxu0 0.0
        %857 = vmatprep.subr.mxu0 0.0
        %858 = vmatpush1.msra.mxu0 0.0
        %859 = vmatprep.subr.mxu0 0.0
        %860 = vmatpush1.msra.mxu0 0.0
        %861 = vmatprep.subr.mxu0 0.0
        %862 = vmatpush1.msra.mxu0 0.0
        %863 = vmatprep.subr.mxu0 0.0
        %864 = vmatpush1.msra.mxu0 0.0
        %865 = vmatprep.subr.mxu0 0.0
        %866 = vmatpush1.msra.mxu0 0.0
        %867 = vmatprep.subr.mxu0 0.0
        %868 = vmatpush1.msra.mxu0 0.0
        %869 = vmatprep.subr.mxu0 0.0
        %870 = vmatpush1.msra.mxu0 0.0
        %871 = vmatprep.subr.mxu0 0.0
        %872 = vmatpush1.msra.mxu0 0.0
        %873 = vmatprep.subr.mxu0 0.0
        %874 = vmatpush1.msra.mxu0 0.0
        %875 = vmatprep.subr.mxu0 0.0
        %876 = vmatpush1.msra.mxu0 0.0
        %877 = vmatprep.subr.mxu0 0.0
        %878 = vmatpush1.msra.mxu0 0.0
        %879 = vmatprep.subr.mxu0 0.0
        %880 = vmatpush1.msra.mxu0 0.0
        %881 = vmatprep.subr.mxu0 0.0
        %882 = vmatpush1.msra.mxu0 0.0
        %883 = vmatprep.subr.mxu0 0.0
        %884 = vmatpush1.msra.mxu0 0.0
        %885 = vmatprep.subr.mxu0 0.0
        %886 = vmatpush1.msra.mxu0 0.0
        %887 = vmatprep.subr.mxu0 0.0
        %888 = vmatpush1.msra.mxu0 0.0
        %889 = vmatprep.subr.mxu0 0.0
        %890 = vmatpush1.msra.mxu0 0.0
        %891 = vmatprep.subr.mxu0 0.0
        %892 = vmatpush1.msra.mxu0 0.0
        %893 = vmatprep.subr.mxu0 0.0
        %894 = vmatpush1.msra.mxu0 0.0
        %895 = vmatprep.subr.mxu0 0.0
        %896 = vmatpush1.msra.mxu0 0.0
        %897 = vmatprep.subr.mxu0 0.0
        %898 = vmatpush1.msra.mxu0 0.0
        %899 = vmatprep.subr.mxu0 0.0
        %900 = vmatpush1.msra.mxu0 0.0
        %901 = vmatprep.subr.mxu0 0.0
        %902 = vmatpush1.msra.mxu0 0.0
        %903 = vmatprep.subr.mxu0 0.0
        %904 = vmatpush1.msra.mxu0 0.0
        %905 = vmatprep.subr.mxu0 0.0
        %906 = vmatpush1.msra.mxu0 0.0
        %907 = vmatprep.mubr.f32.mxu0 0.0
        %908 = vmatmul.mubr.f32.gmra.mrb[0].mxu0 %v255
        %v909 = vpop.f32.mrb[0].mxu0
        %v910 = vadd.f32 %v236, %v909
        %v911 = vpop.f32.mrb[0].mxu0
        %v912 = vadd.f32 %v236, %v911
        %913 = vmatprep.mubr.f32.mxu0 0.0
        %914 = vmatmul.mubr.f32.gmra.mrb[0].mxu0 %v258
        %v915 = vpop.f32.mrb[0].mxu0
        %v916 = vadd.f32 %v241, %v915
        %v917 = vpop.f32.mrb[0].mxu0
        %v918 = vadd.f32 %v241, %v917
        %919 = vmatprep.mubr.f32.mxu0 0.0
        %920 = vmatmul.mubr.f32.gmra.mrb[0].mxu0 %v261
        %v921 = vpop.f32.mrb[0].mxu0
        %v922 = vadd.f32 %v246, %v921
        %v923 = vpop.f32.mrb[0].mxu0
        %v924 = vadd.f32 %v246, %v923
        %925 = vmatprep.mubr.f32.mxu0 0.0
        %926 = vmatmul.mubr.f32.gmra.mrb[0].mxu0 %v264
        %v927 = vpop.f32.mrb[0].mxu0
        %v928 = vadd.f32 %v251, %v927
        %v929 = vpop.f32.mrb[0].mxu0
        %v930 = vadd.f32 %v251, %v929
        %931 = vdwg.mxu0
        %v932 = vmax.f32 %v376, 0.0
        %v933 = vmax.f32 %v378, 0.0
        %v934 = vmax.f32 %v465, 0.0
        %v935 = vmax.f32 %v467, 0.0
        %v936 = vmax.f32 %v554, 0.0
        %v937 = vmax.f32 %v556, 0.0
        %v938 = vmax.f32 %v643, 0.0
        %v939 = vmax.f32 %v645, 0.0
        %v940 = vmax.f32 %v732, 0.0
        %v941 = vmax.f32 %v734, 0.0
        %v942 = vmax.f32 %v821, 0.0
        %v943 = vmax.f32 %v823, 0.0
        %v944 = vmax.f32 %v910, 0.0
        %v945 = vmax.f32 %v912, 0.0
        %v946 = vmax.f32 %v382, 0.0
        %v947 = vmax.f32 %v384, 0.0
        %v948 = vmax.f32 %v471, 0.0
        %v949 = vmax.f32 %v473, 0.0
        %v950 = vmax.f32 %v560, 0.0
        %v951 = vmax.f32 %v562, 0.0
        %v952 = vmax.f32 %v649, 0.0
        %v953 = vmax.f32 %v651, 0.0
        %v954 = vmax.f32 %v738, 0.0
        %v955 = vmax.f32 %v740, 0.0
        %v956 = vmax.f32 %v827, 0.0
        %v957 = vmax.f32 %v829, 0.0
        %v958 = vmax.f32 %v916, 0.0
        %v959 = vmax.f32 %v918, 0.0
        %v960 = vmax.f32 %v388, 0.0
        %v961 = vmax.f32 %v390, 0.0
        %v962 = vmax.f32 %v477, 0.0
        %v963 = vmax.f32 %v479, 0.0
        %v964 = vmax.f32 %v566, 0.0
        %v965 = vmax.f32 %v568, 0.0
        %v966 = vmax.f32 %v655, 0.0
        %v967 = vmax.f32 %v657, 0.0
        %v968 = vmax.f32 %v744, 0.0
        %v969 = vmax.f32 %v746, 0.0
        %v970 = vmax.f32 %v833, 0.0
        %v971 = vmax.f32 %v835, 0.0
        %v972 = vmax.f32 %v922, 0.0
        %v973 = vmax.f32 %v924, 0.0
        %v974 = vmax.f32 %v394, 0.0
        %v975 = vmax.f32 %v396, 0.0
        %v976 = vmax.f32 %v483, 0.0
        %v977 = vmax.f32 %v485, 0.0
        %v978 = vmax.f32 %v572, 0.0
        %v979 = vmax.f32 %v574, 0.0
        %v980 = vmax.f32 %v661, 0.0
        %v981 = vmax.f32 %v663, 0.0
        %v982 = vmax.f32 %v750, 0.0
        %v983 = vmax.f32 %v752, 0.0
        %v984 = vmax.f32 %v839, 0.0
        %v985 = vmax.f32 %v841, 0.0
        %v986 = vmax.f32 %v928, 0.0
        %v987 = vmax.f32 %v930, 0.0
        %988 = vst [vmem:[%s163] sm:$0xff] %v932
        %989 = vst [vmem:[%s163 + $0x8] sm:$0xff] %v933
        %990 = vst [vmem:[%s163 + $0x10] sm:$0xff] %v934
        %991 = vst [vmem:[%s163 + $0x18] sm:$0xff] %v935
        %992 = vst [vmem:[%s163 + $0x20] sm:$0xff] %v936
        %993 = vst [vmem:[%s163 + $0x28] sm:$0xff] %v937
        %994 = vst [vmem:[%s163 + $0x30] sm:$0xff] %v938
        %995 = vst [vmem:[%s163 + $0x38] sm:$0xff] %v939
        %996 = vst [vmem:[%s163 + $0x40] sm:$0xff] %v940
        %997 = vst [vmem:[%s163 + $0x48] sm:$0xff] %v941
        %998 = vst [vmem:[%s163 + $0x50] sm:$0xff] %v942
        %999 = vst [vmem:[%s163 + $0x58] sm:$0xff] %v943
        %1000 = vst [vmem:[%s163 + $0x60] sm:$0xff] %v944
        %vm1001 = vcmask 138240
        %1002 = vst.msk [vmem:[%s163 + $0x68] sm:$0xff] %vm1001, %v945
        %1003 = vst [vmem:[%s163 + $0x70] sm:$0xff] %v946
        %1004 = vst [vmem:[%s163 + $0x78] sm:$0xff] %v947
        %1005 = vst [vmem:[%s163 + $0x80] sm:$0xff] %v948
        %1006 = vst [vmem:[%s163 + $0x88] sm:$0xff] %v949
        %1007 = vst [vmem:[%s163 + $0x90] sm:$0xff] %v950
        %1008 = vst [vmem:[%s163 + $0x98] sm:$0xff] %v951
        %1009 = vst [vmem:[%s163 + $0xa0] sm:$0xff] %v952
        %1010 = vst [vmem:[%s163 + $0xa8] sm:$0xff] %v953
        %1011 = vst [vmem:[%s163 + $0xb0] sm:$0xff] %v954
        %1012 = vst [vmem:[%s163 + $0xb8] sm:$0xff] %v955
        %1013 = vst [vmem:[%s163 + $0xc0] sm:$0xff] %v956
        %1014 = vst [vmem:[%s163 + $0xc8] sm:$0xff] %v957
        %1015 = vst [vmem:[%s163 + $0xd0] sm:$0xff] %v958
        %1016 = vst.msk [vmem:[%s163 + $0xd8] sm:$0xff] %vm1001, %v959
        %1017 = vst [vmem:[%s163 + $0xe0] sm:$0xff] %v960
        %1018 = vst [vmem:[%s163 + $0xe8] sm:$0xff] %v961
        %1019 = vst [vmem:[%s163 + $0xf0] sm:$0xff] %v962
        %1020 = vst [vmem:[%s163 + $0xf8] sm:$0xff] %v963
        %1021 = vst [vmem:[%s163 + $0x100] sm:$0xff] %v964
        %1022 = vst [vmem:[%s163 + $0x108] sm:$0xff] %v965
        %1023 = vst [vmem:[%s163 + $0x110] sm:$0xff] %v966
        %1024 = vst [vmem:[%s163 + $0x118] sm:$0xff] %v967
        %1025 = vst [vmem:[%s163 + $0x120] sm:$0xff] %v968
        %1026 = vst [vmem:[%s163 + $0x128] sm:$0xff] %v969
        %1027 = vst [vmem:[%s163 + $0x130] sm:$0xff] %v970
        %1028 = vst [vmem:[%s163 + $0x138] sm:$0xff] %v971
        %1029 = vst [vmem:[%s163 + $0x140] sm:$0xff] %v972
        %1030 = vst.msk [vmem:[%s163 + $0x148] sm:$0xff] %vm1001, %v973
        %1031 = vst [vmem:[%s163 + $0x150] sm:$0xff] %v974
        %1032 = vst [vmem:[%s163 + $0x158] sm:$0xff] %v975
        %1033 = vst [vmem:[%s163 + $0x160] sm:$0xff] %v976
        %1034 = vst [vmem:[%s163 + $0x168] sm:$0xff] %v977
        %1035 = vst [vmem:[%s163 + $0x170] sm:$0xff] %v978
        %1036 = vst [vmem:[%s163 + $0x178] sm:$0xff] %v979
        %1037 = vst [vmem:[%s163 + $0x180] sm:$0xff] %v980
        %1038 = vst [vmem:[%s163 + $0x188] sm:$0xff] %v981
        %1039 = vst [vmem:[%s163 + $0x190] sm:$0xff] %v982
        %1040 = vst [vmem:[%s163 + $0x198] sm:$0xff] %v983
        %1041 = vst [vmem:[%s163 + $0x1a0] sm:$0xff] %v984
        %1042 = vst [vmem:[%s163 + $0x1a8] sm:$0xff] %v985
        %1043 = vst [vmem:[%s163 + $0x1b0] sm:$0xff] %v986
        %1044 = vst.msk [vmem:[%s163 + $0x1b8] sm:$0xff] %vm1001, %v987
        %s1045 = sand.u32 %s93, 1
        %s1046 = scalar_lea.sflag [#allocation3], %s1045
        %s1047 = sand.u32 %s93, 1
        %s1048 = smul.addr %s1047, 448
        %s1049 = scalar_lea.vmem [#allocation2], %s1048
        // Predicated region
        $region33: #{tpu_custom_call.1} parent=31 // pred_check
          %p1050 = pneg %p103
        $region34: #{tpu_custom_call.1} parent=31 // pred_check_branch
          %1052 = sbr.rel (%p1050) target = $region36
        $region35: #{tpu_custom_call.1} parent=31 // pred_region
          %s1054 = ssub.s32 7168, 7168
          %1055 = vsyncadd %s1046, %s1054
          %s1056 = smul.addr %s17, 56
          %s1057 = smul.addr %s1056, 128
          %s1058 = scalar_lea.hbm %s3, %s1057
          %s1059 = sshll.u32 %s1049, 4
          %s1060 = int_to_ptr.vmem [resolvable:$true] %s1059
          %1065 = dma.vmem_to_hbm [thread:$0]  %s1060, 7168, %s1058, %s1046, 1792, 1792, 112
        $region36: #{tpu_custom_call.1} parent=31 // pred_fallthru
          _
      $region32: #{tpu_custom_call.1} parent=5 // pred_fallthru
        _
      %p1066 = scmp.le.s32.totalorder 2, %s12
      // Predicated region
      $region37: #{tpu_custom_call.1} parent=5 // pred_check
        %p1067 = pneg %p1066
      $region38: #{tpu_custom_call.1} parent=5 // pred_check_branch
        %1069 = sbr.rel (%p1067) target = $region40
      $region39: #{tpu_custom_call.1} parent=5 // pred_region
        %s1070 = ssub.s32 %s12, 2
        // Predicated region
        $region41: #{tpu_custom_call.1} parent=39 // pred_check
          %p1071 = pneg %p109
        $region42: #{tpu_custom_call.1} parent=39 // pred_check_branch
          %1073 = sbr.rel (%p1071) target = $region44
        $region43: #{tpu_custom_call.1} parent=39 // pred_region
          %s1074 = sand.u32 %s94, 1
          %s1075 = scalar_lea.sflag [#allocation3], %s1074
          %s1076 = sand.u32 %s94, 1
          %s1077 = smul.addr %s1076, 448
          %s1078 = scalar_lea.vmem [#allocation2], %s1077
          %1079 = dma.done %s1075, 7168
        $region44: #{tpu_custom_call.1} parent=39 // pred_fallthru
          _
      $region40: #{tpu_custom_call.1} parent=5 // pred_fallthru
        _
    $region6: #{tpu_custom_call.1} parent=1 // loop_footer
      %s16 = sadd.s32 1, %s12
    $region7: #{tpu_custom_call.1} parent=1 // loop_footer_branch
      %11 = sbr.rel target = $region3
    $region8: #{tpu_custom_call.1} parent=1 // loop_exit
      _
    %1080 = vsyncpa [#allocation3], 1
    %s1081 = scalar_lea.sflag [#allocation3], 1
    %1082 = vsyncpa %s1081, 1

</llo_original>
